<compile_context>
chip_gen: v7x
topology: tpu7x:2x2x1
jax: 0.10.0
libtpu: 0.0.40
codegen_flags: <defaults>
</compile_context>

<pallas_src>
import jax
import jax.numpy as jnp
from jax.experimental import pallas as pl
from jax.experimental.pallas import tpu as pltpu

_LANES = 1024            # lane-dense last dim (multiple of 128)
_SUBLANES = 8            # f32 sublane granularity
_MAX_BLOCK_ROWS = 512    # 512 x 1024 x 4 B = 2 MiB per f32 block buffer
_TARGET_GRID_STEPS = 8   # enough steps for pipeline steady state / both v7x TCs


def _softplus_f32(x):
    """Numerically stable softplus matching torch.nn.Softplus(beta=1, threshold=20)."""
    sp = jnp.maximum(x, 0.0) + jnp.log1p(jnp.exp(-jnp.abs(x)))
    return jnp.where(x > 20.0, x, sp)


def _softplus_kernel(w_ref, o_ref):
    # Pure elementwise VPU/EUP work on a sublane/lane-dense VMEM tile; exactly two
    # transcendentals per element (exp + log1p). Upcast to f32 for bf16 params.
    x = w_ref[...].astype(jnp.float32)
    o_ref[...] = _softplus_f32(x).astype(o_ref.dtype)


def _choose_block_rows(rows_padded: int) -> int:
    """Block rows: multiple of 8, ~_TARGET_GRID_STEPS grid steps, <=512 rows (2 MiB f32)."""
    br = pl.cdiv(rows_padded, _TARGET_GRID_STEPS)
    br = pl.cdiv(br, _SUBLANES) * _SUBLANES
    return max(_SUBLANES, min(br, _MAX_BLOCK_ROWS))


def init_weight_optimizer(key, dim: int, dtype=jnp.float32):
    """Mirror of WeightOptimizer.__init__: raw_weights ~ N(0, 1) with shape (dim,).

    The parameter lives permanently in a padded (rows_padded, 1024) layout; the pad
    happens once here (outside the hot path) and padded entries are never returned.
    """
    raw = jax.random.normal(key, (dim,), dtype=dtype)
    rows = pl.cdiv(dim, _LANES)
    rows_padded = pl.cdiv(rows, _SUBLANES) * _SUBLANES   # multiple of 8 only
    padded_len = rows_padded * _LANES
    raw_padded = jnp.pad(raw, (0, padded_len - dim)).reshape(rows_padded, _LANES)
    return {"raw_weights_padded": raw_padded, "dim": dim}


@jax.jit
def weight_optimizer_forward_padded(raw_weights_padded: jax.Array) -> jax.Array:
    """softplus over the pre-padded (rows_padded, 1024) parameter slab.

    Hot path: a single read+write elementwise pass, no pad/slice copies. Consumers
    that can work in the padded layout should use this output directly;
    `weight_optimizer_forward` below gives the logical (dim,) view.
    """
    rows_padded, lanes = raw_weights_padded.shape
    assert lanes == _LANES and rows_padded % _SUBLANES == 0
    block_rows = _choose_block_rows(rows_padded)
    grid = (pl.cdiv(rows_padded, block_rows),)   # last block may be partial (masked tail)

    return pl.pallas_call(
        _softplus_kernel,
        out_shape=jax.ShapeDtypeStruct((rows_padded, _LANES), raw_weights_padded.dtype),
        grid=grid,
        in_specs=[pl.BlockSpec((block_rows, _LANES), lambda i: (i, 0))],
        out_specs=pl.BlockSpec((block_rows, _LANES), lambda i: (i, 0)),
        # No input_output_aliases: raw_weights must be preserved (it is a trainable
        # parameter); aliasing a non-donated input would just force a defensive copy.
        compiler_params=pltpu.CompilerParams(
            dimension_semantics=("parallel",),   # v7x: shard row blocks across both TCs
        ),
    )(raw_weights_padded)


def weight_optimizer_forward(params) -> jax.Array:
    """Exact module semantics: softplus(raw_weights) with shape (dim,).

    The final reshape/slice materializes the logical view; hot-path consumers should
    take the padded slab from weight_optimizer_forward_padded instead.
    """
    out_padded = weight_optimizer_forward_padded(params["raw_weights_padded"])
    return out_padded.reshape(-1)[: params["dim"]]


if __name__ == "__main__":
    key = jax.random.PRNGKey(0)
    k_small, k_med = jax.random.split(key)

    # Case 1: module-typical tiny parameter (dim=32) -> single (8, 1024) block.
    dim_small = 32
    params_small = init_weight_optimizer(k_small, dim_small)
    out_small = weight_optimizer_forward(params_small)
    jax.block_until_ready(out_small)
    raw_small = params_small["raw_weights_padded"].reshape(-1)[:dim_small]
    assert out_small.shape == (dim_small,)
    assert jnp.allclose(out_small, _softplus_f32(raw_small), atol=1e-6)

    # Case 2: larger parameter -> multi-step parallel grid with masked tail
    # (dim=100_000: rows=98 -> 104 padded, block_rows=16, grid=(7,)).
    dim_med = 100_000
    params_med = init_weight_optimizer(k_med, dim_med)
    out_med = weight_optimizer_forward(params_med)
    jax.block_until_ready(out_med)
    raw_med = params_med["raw_weights_padded"].reshape(-1)[:dim_med]
    assert out_med.shape == (dim_med,)
    assert jnp.allclose(out_med, _softplus_f32(raw_med), atol=1e-6), "mismatch vs reference"

    print("KERNEL_OK")
</pallas_src>

<mosaic_0001>
module attributes {stable_mosaic.version = 11 : i64} {
  func.func @_softplus_kernel(%arg0: i32, %arg1: memref<8x1024xf32, #tpu.memory_space<vmem>>, %arg2: memref<8x1024xf32, #tpu.memory_space<vmem>>) attributes {dimension_semantics = [#tpu.dimension_semantics<parallel>], iteration_bounds = array<i64: 1>, scalar_prefetch = 0 : i64, scratch_operands = 0 : i64, tpu.core_type = #tpu.core_type<tc>, window_params = [{transform_indices = @transform_0, window_bounds = array<i64: 8, 1024>}, {transform_indices = @transform_1, window_bounds = array<i64: 8, 1024>}]} {
    %c0 = arith.constant 0 : index
    %c0_0 = arith.constant 0 : index
    %0 = vector.load %arg1[%c0, %c0_0] : memref<8x1024xf32, #tpu.memory_space<vmem>>, vector<8x1024xf32>
    %cst = arith.constant 0.000000e+00 : f32
    %1 = vector.broadcast %cst : f32 to vector<8x1024xf32>
    %2 = arith.maximumf %0, %1 : vector<8x1024xf32>
    %3 = math.absf %0 : vector<8x1024xf32>
    %cst_1 = arith.constant 0.000000e+00 : f32
    %4 = vector.broadcast %cst_1 : f32 to vector<8x1024xf32>
    %5 = arith.subf %4, %3 : vector<8x1024xf32>
    %6 = math.exp %5 : vector<8x1024xf32>
    %7 = math.log1p %6 : vector<8x1024xf32>
    %8 = arith.addf %2, %7 : vector<8x1024xf32>
    %cst_2 = arith.constant 2.000000e+01 : f32
    %9 = vector.broadcast %cst_2 : f32 to vector<8x1024xf32>
    %10 = arith.cmpf ogt, %0, %9 : vector<8x1024xf32>
    %11 = arith.select %10, %0, %8 : vector<8x1024xi1>, vector<8x1024xf32>
    %c0_3 = arith.constant 0 : index
    %c0_4 = arith.constant 0 : index
    %12 = vector.load %arg2[%c0_3, %c0_4] : memref<8x1024xf32, #tpu.memory_space<vmem>>, vector<8x1024xf32>
    tpu.vector_store %arg2[%c0_3, %c0_4], %11 {strides = array<i32>} : memref<8x1024xf32, #tpu.memory_space<vmem>>, vector<8x1024xf32>,
    return
  }
  func.func @transform_0(%arg0: i32) -> (i32, i32) {
    %c0_i32 = arith.constant 0 : i32
    %c0_i32_0 = arith.constant 0 : i32
    return %arg0, %c0_i32 : i32, i32
  }
  func.func @transform_1(%arg0: i32) -> (i32, i32) {
    %c0_i32 = arith.constant 0 : i32
    %c0_i32_0 = arith.constant 0 : i32
    return %arg0, %c0_i32 : i32, i32
  }
}

</mosaic_0001>

<llo_original>
// kernel: weight_optimizer_forward_padded.1
$region0: #{weight_optimizer_forward_padded.1}
  #allocation0 [shape = 'u32[]', space=smem, size = 0x4, offset = 0x4, fixed_abs, tag = 'smem constant byte address 0x4 - core index']
  #allocation1 [shape = 'u32[144,128]{1,0:T(1,128)}', space=vmem, size = 0x12000, scoped, tag = 'internal scratch']
  %s0 = inlined_call_operand.hbm [shape: f32[8,1024], index: 0, kind: input, shape index: {}]
  %s1 = inlined_call_operand.hbm [shape: f32[8,1024], index: 1, kind: output, shape index: {}]
  %s2 = sld [smem:[#allocation0]]
  $region18: #{weight_optimizer_forward_padded.1} parent=0
    _
  %s4 = ssub.s32 1, %s2
  %s5 = scalar_select 0, %s4, %s2
  $region1: #{weight_optimizer_forward_padded.1} parent=0
    #allocation2 [shape = 'u8[32768]{0}', space=vmem, size = 0x8000, scoped, tag = 'input window, operand 0, single buffered']
    #allocation3 [shape = 's32[1]{0}', space=sflag, size = 0x4, scoped, tag = 'scoped memory for weight_optimizer_forward_padded.1']
    #allocation4 [shape = 's32[1]{0}', space=sflag, size = 0x4, scoped, tag = 'scoped memory for weight_optimizer_forward_padded.1']
    #allocation5 [shape = 'u8[32768]{0}', space=vmem, size = 0x8000, scoped, tag = 'output window, operand 0, single buffered']
    %6 = vsyncpa [#allocation3], 0
    %7 = vsyncpa [#allocation4], 0
    // Predicated region
    $region2: #{weight_optimizer_forward_padded.1} parent=1 // pred_check
      _
    $region3: #{weight_optimizer_forward_padded.1} parent=1 // pred_check_branch
      %9 = sbr.rel (0) target = $region5
    $region4: #{weight_optimizer_forward_padded.1} parent=1 // pred_region
      %s11 = ssub.s32 1024, 1024
      %12 = vsyncadd [#allocation3], %s11
      %s14 = sshll.u32 [#allocation2], 4
      %s15 = int_to_ptr.vmem [resolvable:$true] %s14
      %17 = dma.hbm_to_vmem [thread:$0]  %s0, 1024, %s15, [#allocation3]
    $region5: #{weight_optimizer_forward_padded.1} parent=1 // pred_fallthru
      _
    // Predicated region
    $region6: #{weight_optimizer_forward_padded.1} parent=1 // pred_check
      _
    $region7: #{weight_optimizer_forward_padded.1} parent=1 // pred_check_branch
      %19 = sbr.rel (0) target = $region9
    $region8: #{weight_optimizer_forward_padded.1} parent=1 // pred_region
      %20 = dma.done [#allocation3], 1024
    $region9: #{weight_optimizer_forward_padded.1} parent=1 // pred_fallthru
      _
    %v21 = vld [vmem:[#allocation2] sm:$0xff]
    %v22 = vld [vmem:[#allocation2 + $0x8] sm:$0xff]
    %v23 = vld [vmem:[#allocation2 + $0x10] sm:$0xff]
    %v24 = vld [vmem:[#allocation2 + $0x18] sm:$0xff]
    %v25 = vld [vmem:[#allocation2 + $0x20] sm:$0xff]
    %v26 = vld [vmem:[#allocation2 + $0x28] sm:$0xff]
    %v27 = vld [vmem:[#allocation2 + $0x30] sm:$0xff]
    %v28 = vld [vmem:[#allocation2 + $0x38] sm:$0xff]
    %v29 = vmax.f32 %v21, 0.0
    %v30 = vmax.f32 %v22, 0.0
    %v31 = vmax.f32 %v23, 0.0
    %v32 = vmax.f32 %v24, 0.0
    %v33 = vmax.f32 %v25, 0.0
    %v34 = vmax.f32 %v26, 0.0
    %v35 = vmax.f32 %v27, 0.0
    %v36 = vmax.f32 %v28, 0.0
    %v37 = vand.u32 2147483647, %v21
    %v38 = vand.u32 2147483647, %v22
    %v39 = vand.u32 2147483647, %v23
    %v40 = vand.u32 2147483647, %v24
    %v41 = vand.u32 2147483647, %v25
    %v42 = vand.u32 2147483647, %v26
    %v43 = vand.u32 2147483647, %v27
    %v44 = vand.u32 2147483647, %v28
    %v45 = vsub.f32 0.0, %v37
    %v46 = vsub.f32 0.0, %v38
    %v47 = vsub.f32 0.0, %v39
    %v48 = vsub.f32 0.0, %v40
    %v49 = vsub.f32 0.0, %v41
    %v50 = vsub.f32 0.0, %v42
    %v51 = vsub.f32 0.0, %v43
    %v52 = vsub.f32 0.0, %v44
    %v53 = vmul.f32 %v45, 1.442695
    %v54 = vpow.pop %v53
    %v55 = vmul.f32 %v46, 1.442695
    %v56 = vpow.pop %v55
    %v57 = vmul.f32 %v47, 1.442695
    %v58 = vpow.pop %v57
    %v59 = vmul.f32 %v48, 1.442695
    %v60 = vpow.pop %v59
    %v61 = vmul.f32 %v49, 1.442695
    %v62 = vpow.pop %v61
    %v63 = vmul.f32 %v50, 1.442695
    %v64 = vpow.pop %v63
    %v65 = vmul.f32 %v51, 1.442695
    %v66 = vpow.pop %v65
    %v67 = vmul.f32 %v52, 1.442695
    %v68 = vpow.pop %v67
    %v69 = vadd.f32 %v54, 1.0
    %v70 = vlog2.pop %v69
    %v71 = vmul.f32 %v70, 0.6931472
    %v72 = vmul.f32 -0.5, %v54
    %v73 = vadd.f32 %v72, 1.0
    %v74 = vmul.f32 %v73, %v54
    %v75 = vand.u32 2147483647, %v54
    %vm76 = vcmp.lt.f32.partialorder %v75, 0.0004427343
    %v77 = vsel %vm76, %v74, %v71
    %v78 = vadd.f32 %v56, 1.0
    %v79 = vlog2.pop %v78
    %v80 = vmul.f32 %v79, 0.6931472
    %v81 = vmul.f32 -0.5, %v56
    %v82 = vadd.f32 %v81, 1.0
    %v83 = vmul.f32 %v82, %v56
    %v84 = vand.u32 2147483647, %v56
    %vm85 = vcmp.lt.f32.partialorder %v84, 0.0004427343
    %v86 = vsel %vm85, %v83, %v80
    %v87 = vadd.f32 %v58, 1.0
    %v88 = vlog2.pop %v87
    %v89 = vmul.f32 %v88, 0.6931472
    %v90 = vmul.f32 -0.5, %v58
    %v91 = vadd.f32 %v90, 1.0
    %v92 = vmul.f32 %v91, %v58
    %v93 = vand.u32 2147483647, %v58
    %vm94 = vcmp.lt.f32.partialorder %v93, 0.0004427343
    %v95 = vsel %vm94, %v92, %v89
    %v96 = vadd.f32 %v60, 1.0
    %v97 = vlog2.pop %v96
    %v98 = vmul.f32 %v97, 0.6931472
    %v99 = vmul.f32 -0.5, %v60
    %v100 = vadd.f32 %v99, 1.0
    %v101 = vmul.f32 %v100, %v60
    %v102 = vand.u32 2147483647, %v60
    %vm103 = vcmp.lt.f32.partialorder %v102, 0.0004427343
    %v104 = vsel %vm103, %v101, %v98
    %v105 = vadd.f32 %v62, 1.0
    %v106 = vlog2.pop %v105
    %v107 = vmul.f32 %v106, 0.6931472
    %v108 = vmul.f32 -0.5, %v62
    %v109 = vadd.f32 %v108, 1.0
    %v110 = vmul.f32 %v109, %v62
    %v111 = vand.u32 2147483647, %v62
    %vm112 = vcmp.lt.f32.partialorder %v111, 0.0004427343
    %v113 = vsel %vm112, %v110, %v107
    %v114 = vadd.f32 %v64, 1.0
    %v115 = vlog2.pop %v114
    %v116 = vmul.f32 %v115, 0.6931472
    %v117 = vmul.f32 -0.5, %v64
    %v118 = vadd.f32 %v117, 1.0
    %v119 = vmul.f32 %v118, %v64
    %v120 = vand.u32 2147483647, %v64
    %vm121 = vcmp.lt.f32.partialorder %v120, 0.0004427343
    %v122 = vsel %vm121, %v119, %v116
    %v123 = vadd.f32 %v66, 1.0
    %v124 = vlog2.pop %v123
    %v125 = vmul.f32 %v124, 0.6931472
    %v126 = vmul.f32 -0.5, %v66
    %v127 = vadd.f32 %v126, 1.0
    %v128 = vmul.f32 %v127, %v66
    %v129 = vand.u32 2147483647, %v66
    %vm130 = vcmp.lt.f32.partialorder %v129, 0.0004427343
    %v131 = vsel %vm130, %v128, %v125
    %v132 = vadd.f32 %v68, 1.0
    %v133 = vlog2.pop %v132
    %v134 = vmul.f32 %v133, 0.6931472
    %v135 = vmul.f32 -0.5, %v68
    %v136 = vadd.f32 %v135, 1.0
    %v137 = vmul.f32 %v136, %v68
    %v138 = vand.u32 2147483647, %v68
    %vm139 = vcmp.lt.f32.partialorder %v138, 0.0004427343
    %v140 = vsel %vm139, %v137, %v134
    %v141 = vadd.f32 %v29, %v77
    %v142 = vadd.f32 %v30, %v86
    %v143 = vadd.f32 %v31, %v95
    %v144 = vadd.f32 %v32, %v104
    %v145 = vadd.f32 %v33, %v113
    %v146 = vadd.f32 %v34, %v122
    %v147 = vadd.f32 %v35, %v131
    %v148 = vadd.f32 %v36, %v140
    %vm149 = vcmp.gt.f32.partialorder %v21, 20.0
    %vm150 = vcmp.gt.f32.partialorder %v22, 20.0
    %vm151 = vcmp.gt.f32.partialorder %v23, 20.0
    %vm152 = vcmp.gt.f32.partialorder %v24, 20.0
    %vm153 = vcmp.gt.f32.partialorder %v25, 20.0
    %vm154 = vcmp.gt.f32.partialorder %v26, 20.0
    %vm155 = vcmp.gt.f32.partialorder %v27, 20.0
    %vm156 = vcmp.gt.f32.partialorder %v28, 20.0
    %v157 = vsel %vm149, %v21, %v141
    %v158 = vsel %vm150, %v22, %v142
    %v159 = vsel %vm151, %v23, %v143
    %v160 = vsel %vm152, %v24, %v144
    %v161 = vsel %vm153, %v25, %v145
    %v162 = vsel %vm154, %v26, %v146
    %v163 = vsel %vm155, %v27, %v147
    %v164 = vsel %vm156, %v28, %v148
    %165 = vst [vmem:[#allocation5] sm:$0xff] %v157
    %166 = vst [vmem:[#allocation5 + $0x8] sm:$0xff] %v158
    %167 = vst [vmem:[#allocation5 + $0x10] sm:$0xff] %v159
    %168 = vst [vmem:[#allocation5 + $0x18] sm:$0xff] %v160
    %169 = vst [vmem:[#allocation5 + $0x20] sm:$0xff] %v161
    %170 = vst [vmem:[#allocation5 + $0x28] sm:$0xff] %v162
    %171 = vst [vmem:[#allocation5 + $0x30] sm:$0xff] %v163
    %172 = vst [vmem:[#allocation5 + $0x38] sm:$0xff] %v164
    // Predicated region
    $region10: #{weight_optimizer_forward_padded.1} parent=1 // pred_check
      _
    $region11: #{weight_optimizer_forward_padded.1} parent=1 // pred_check_branch
      %174 = sbr.rel (0) target = $region13
    $region12: #{weight_optimizer_forward_padded.1} parent=1 // pred_region
      %s176 = ssub.s32 1024, 1024
      %177 = vsyncadd [#allocation4], %s176
      %s179 = sshll.u32 [#allocation5], 4
      %s180 = int_to_ptr.vmem [resolvable:$true] %s179
      %182 = dma.vmem_to_hbm [thread:$0]  %s180, 1024, %s1, [#allocation4]
    $region13: #{weight_optimizer_forward_padded.1} parent=1 // pred_fallthru
      _
    // Predicated region
    $region14: #{weight_optimizer_forward_padded.1} parent=1 // pred_check
      _
    $region15: #{weight_optimizer_forward_padded.1} parent=1 // pred_check_branch
      %184 = sbr.rel (0) target = $region17
    $region16: #{weight_optimizer_forward_padded.1} parent=1 // pred_region
      %185 = dma.done [#allocation4], 1024
    $region17: #{weight_optimizer_forward_padded.1} parent=1 // pred_fallthru
      _
    %186 = vsyncpa [#allocation3], 1
    %187 = vsyncpa [#allocation4], 1

</llo_original>
